<compile_context>
chip_gen: v6e
topology: v6e:2x2x1
jax: 0.10.0
libtpu: 0.0.40
codegen_flags: <defaults>
</compile_context>

<pallas_src>
import functools

import jax
import jax.numpy as jnp
from jax.experimental import pallas as pl
from jax.experimental.pallas import tpu as pltpu

CHP = 128   # conv channels padded to lane width (real hidden = 32, zero-padded)
NCP = 128   # num_classes padded to lane width (real classes = 10, zero-padded)


# -----------------------------------------------------------------------------
# Fused kernel: conv (im2col matmul) + bias + ReLU + avg-pool + FC + softmax
# One grid step per image; everything for that image lives in VMEM.
# -----------------------------------------------------------------------------
def fused_digit_kernel(p_ref, cw_ref, cb_ref, fw_ref, fb_ref, o_ref, *, hw, nc):
    # p_ref : (1, HW, K)   bf16 im2col patch rows for one image (K = 32, zero-padded)
    # cw_ref: (K, CHP)     bf16 conv weight (zero-padded rows/cols)
    # cb_ref: (1, CHP)     f32  conv bias   (zero in padded cols)
    # fw_ref: (CHP, NCP)   f32  fc weight   (zero-padded)
    # fb_ref: (1, NCP)     f32  fc bias     (zero-padded)
    # o_ref : (1, 1, NCP)  f32  softmax probabilities (padded classes = 0)
    patches = p_ref[0]                                              # (HW, K)
    feat = jnp.dot(patches, cw_ref[...],
                   preferred_element_type=jnp.float32)              # MXU, f32 accum
    feat = jnp.maximum(feat + cb_ref[...], 0.0)                     # bias + ReLU (f32)
    pooled = jnp.sum(feat, axis=0, keepdims=True) * (1.0 / hw)      # (1, CHP) avg pool
    logits = jnp.dot(pooled, fw_ref[...],
                     preferred_element_type=jnp.float32) + fb_ref[...]  # (1, NCP)
    # Mask lane-padded classes so softmax is exactly over the real nc classes.
    lane = jax.lax.broadcasted_iota(jnp.int32, logits.shape, 1)
    logits = jnp.where(lane < nc, logits, -1e30)
    m = jnp.max(logits, axis=-1, keepdims=True)
    e = jnp.exp(logits - m)
    o_ref[0] = e / jnp.sum(e, axis=-1, keepdims=True)               # softmax, dim=-1


# -----------------------------------------------------------------------------
# Glue: im2col in plain JAX (3x3 conv, stride 1, padding 1)
# -----------------------------------------------------------------------------
def im2col_3x3(x_nhwc):
    B, H, W, C = x_nhwc.shape
    xp = jnp.pad(x_nhwc, ((0, 0), (1, 1), (1, 1), (0, 0)))
    cols = []
    for dy in range(3):
        for dx in range(3):
            cols.append(xp[:, dy:dy + H, dx:dx + W, :])
    p = jnp.stack(cols, axis=3)                  # (B, H, W, 9, C)
    return p.reshape(B, H * W, 9 * C)            # rows = spatial positions


def digit_model_forward(x_nchw, params, num_classes):
    conv_w, conv_b, fc_w, fc_b = params          # already lane-padded
    B, Cin, H, W = x_nchw.shape
    HW = H * W
    K = conv_w.shape[0]                          # padded contraction dim (32)
    assert HW % 8 == 0

    x_nhwc = jnp.transpose(x_nchw, (0, 2, 3, 1)).astype(jnp.float32)
    patches = im2col_3x3(x_nhwc)                 # (B, HW, 9*Cin)
    patches = jnp.pad(patches, ((0, 0), (0, 0), (0, K - patches.shape[-1])))
    patches = patches.astype(jnp.bfloat16)       # bf16 MXU inputs, f32 accumulation

    kernel = functools.partial(fused_digit_kernel, hw=HW, nc=num_classes)

    flops = 2 * B * (HW * K * CHP + CHP * NCP)
    bytes_accessed = (patches.size * 2 + conv_w.size * 2 + conv_b.size * 4
                      + fc_w.size * 4 + fc_b.size * 4 + B * NCP * 4)
    cost = pl.CostEstimate(flops=flops, transcendentals=B * NCP,
                           bytes_accessed=bytes_accessed)

    out = pl.pallas_call(
        kernel,
        out_shape=jax.ShapeDtypeStruct((B, 1, NCP), jnp.float32),
        grid=(B,),
        in_specs=[
            pl.BlockSpec((1, HW, K), lambda b: (b, 0, 0)),   # per-image patches
            pl.BlockSpec((K, CHP), lambda b: (0, 0)),        # conv weight (resident)
            pl.BlockSpec((1, CHP), lambda b: (0, 0)),        # conv bias
            pl.BlockSpec((CHP, NCP), lambda b: (0, 0)),      # fc weight
            pl.BlockSpec((1, NCP), lambda b: (0, 0)),        # fc bias
        ],
        out_specs=pl.BlockSpec((1, 1, NCP), lambda b: (b, 0, 0)),
        compiler_params=pltpu.CompilerParams(
            dimension_semantics=("parallel",)),              # v7x: both TCs get work
        cost_estimate=cost,
    )(patches, conv_w, conv_b, fc_w, fc_b)

    return out.reshape(B, NCP)[:, :num_classes]


# -----------------------------------------------------------------------------
# Deterministic synthetic parameters (lane-padded; padding is zeros -> exact)
# -----------------------------------------------------------------------------
def init_params(key, in_chans=3, hidden=32, num_classes=10):
    k1, k2, k3, k4 = jax.random.split(key, 4)
    k_raw = 9 * in_chans                           # 3x3 conv taps * in_chans = 27
    k_pad = ((k_raw + 31) // 32) * 32              # pad contraction only to 32
    conv_w = jax.random.normal(k1, (k_raw, hidden), jnp.float32) * 0.1
    conv_w = jnp.pad(conv_w, ((0, k_pad - k_raw), (0, CHP - hidden)))
    conv_b = jnp.pad(jax.random.normal(k2, (1, hidden), jnp.float32) * 0.01,
                     ((0, 0), (0, CHP - hidden)))
    fc_w = jax.random.normal(k3, (hidden, num_classes), jnp.float32) * 0.1
    fc_w = jnp.pad(fc_w, ((0, CHP - hidden), (0, NCP - num_classes)))
    fc_b = jnp.pad(jax.random.normal(k4, (1, num_classes), jnp.float32) * 0.01,
                   ((0, 0), (0, NCP - num_classes)))
    return conv_w.astype(jnp.bfloat16), conv_b, fc_w, fc_b


if __name__ == "__main__":
    key = jax.random.PRNGKey(0)
    kx, kparams = jax.random.split(key)

    B, Cin, H, W = 2, 3, 16, 16          # NCHW, in_chans=3 as in DigitModel
    num_classes = 10

    x = jax.random.normal(kx, (B, Cin, H, W), jnp.float32)
    params = init_params(kparams, in_chans=Cin, hidden=32, num_classes=num_classes)

    fwd = jax.jit(functools.partial(digit_model_forward, num_classes=num_classes))
    probs = jax.block_until_ready(fwd(x, params))

    assert probs.shape == (B, num_classes)
    # softmax rows must sum to 1 (padded classes were masked to -1e30)
    assert jnp.allclose(jnp.sum(probs, axis=-1), 1.0, atol=1e-5)
    assert bool(jnp.all(probs >= 0.0))
    print("KERNEL_OK")
</pallas_src>

<mosaic_0001>
module attributes {stable_mosaic.version = 11 : i64} {
  func.func @fused_digit_kernel(%arg0: i32, %arg1: memref<1x256x32xbf16, #tpu.memory_space<vmem>>, %arg2: memref<32x128xbf16, #tpu.memory_space<vmem>>, %arg3: memref<1x128xf32, #tpu.memory_space<vmem>>, %arg4: memref<128x128xf32, #tpu.memory_space<vmem>>, %arg5: memref<1x128xf32, #tpu.memory_space<vmem>>, %arg6: memref<1x1x128xf32, #tpu.memory_space<vmem>>) attributes {dimension_semantics = [#tpu.dimension_semantics<parallel>], iteration_bounds = array<i64: 2>, scalar_prefetch = 0 : i64, scratch_operands = 0 : i64, tpu.core_type = #tpu.core_type<tc>, window_params = [{transform_indices = @transform_0, window_bounds = array<i64: 1, 256, 32>}, {pipeline_mode = #tpu.pipeline_mode<synchronous>, transform_indices = @transform_1, window_bounds = array<i64: 32, 128>}, {pipeline_mode = #tpu.pipeline_mode<synchronous>, transform_indices = @transform_2, window_bounds = array<i64: 1, 128>}, {pipeline_mode = #tpu.pipeline_mode<synchronous>, transform_indices = @transform_3, window_bounds = array<i64: 128, 128>}, {pipeline_mode = #tpu.pipeline_mode<synchronous>, transform_indices = @transform_4, window_bounds = array<i64: 1, 128>}, {transform_indices = @transform_5, window_bounds = array<i64: 1, 1, 128>}]} {
    %c0 = arith.constant 0 : index
    %c0_0 = arith.constant 0 : index
    %c0_1 = arith.constant 0 : index
    %0 = vector.load %arg1[%c0, %c0_0, %c0_1] : memref<1x256x32xbf16, #tpu.memory_space<vmem>>, vector<1x256x32xbf16>
    %1 = vector.shape_cast %0 : vector<1x256x32xbf16> to vector<256x32xbf16>
    %c0_2 = arith.constant 0 : index
    %c0_3 = arith.constant 0 : index
    %2 = vector.load %arg2[%c0_2, %c0_3] : memref<32x128xbf16, #tpu.memory_space<vmem>>, vector<32x128xbf16>
    %cst = arith.constant dense<0.000000e+00> : vector<256x128xf32>
    %3 = tpu.matmul %1, %2, %cst {dimension_numbers = #tpu.dot_dimension_numbers<[1], [0], [0], [1], [0, 0, 1, 1], [], []>} : vector<256x32xbf16>, vector<32x128xbf16>, vector<256x128xf32> -> vector<256x128xf32>
    %c0_4 = arith.constant 0 : index
    %c0_5 = arith.constant 0 : index
    %4 = vector.load %arg3[%c0_4, %c0_5] : memref<1x128xf32, #tpu.memory_space<vmem>>, vector<1x128xf32>
    %5 = vector.broadcast %4 : vector<1x128xf32> to vector<256x128xf32>
    %6 = arith.addf %3, %5 : vector<256x128xf32>
    %cst_6 = arith.constant 0.000000e+00 : f32
    %7 = vector.broadcast %cst_6 : f32 to vector<256x128xf32>
    %8 = arith.maximumf %6, %7 : vector<256x128xf32>
    %cst_7 = arith.constant dense<0.000000e+00> : vector<128xf32>
    %9 = vector.multi_reduction <add>, %8, %cst_7 [0] : vector<256x128xf32> to vector<128xf32>
    %10 = vector.shape_cast %9 : vector<128xf32> to vector<1x128xf32>
    %cst_8 = arith.constant 3.906250e-03 : f32
    %11 = vector.broadcast %cst_8 : f32 to vector<1x128xf32>
    %12 = arith.mulf %10, %11 : vector<1x128xf32>
    %c0_9 = arith.constant 0 : index
    %c0_10 = arith.constant 0 : index
    %13 = vector.load %arg4[%c0_9, %c0_10] : memref<128x128xf32, #tpu.memory_space<vmem>>, vector<128x128xf32>
    %cst_11 = arith.constant dense<0.000000e+00> : vector<1x128xf32>
    %14 = tpu.matmul %12, %13, %cst_11 {dimension_numbers = #tpu.dot_dimension_numbers<[1], [0], [0], [1], [0, 0, 1, 1], [], []>} : vector<1x128xf32>, vector<128x128xf32>, vector<1x128xf32> -> vector<1x128xf32>
    %c0_12 = arith.constant 0 : index
    %c0_13 = arith.constant 0 : index
    %15 = vector.load %arg5[%c0_12, %c0_13] : memref<1x128xf32, #tpu.memory_space<vmem>>, vector<1x128xf32>
    %16 = arith.addf %14, %15 : vector<1x128xf32>
    %17 = tpu.iota {dimensions = array<i32: 1>} : vector<1x128xi32>
    %c10_i32 = arith.constant 10 : i32
    %18 = vector.broadcast %c10_i32 : i32 to vector<1x128xi32>
    %19 = arith.cmpi slt, %17, %18 : vector<1x128xi32>
    %cst_14 = arith.constant -1.000000e+30 : f32
    %20 = vector.broadcast %cst_14 : f32 to vector<1x128xf32>
    %21 = arith.select %19, %16, %20 : vector<1x128xi1>, vector<1x128xf32>
    %cst_15 = arith.constant dense<0xFF800000> : vector<1xf32>
    %22 = vector.multi_reduction <maximumf>, %21, %cst_15 [1] : vector<1x128xf32> to vector<1xf32>
    %23 = vector.shape_cast %22 : vector<1xf32> to vector<1x1xf32>
    %24 = vector.broadcast %23 : vector<1x1xf32> to vector<1x128xf32>
    %25 = arith.subf %21, %24 : vector<1x128xf32>
    %26 = math.exp %25 : vector<1x128xf32>
    %cst_16 = arith.constant dense<0.000000e+00> : vector<1xf32>
    %27 = vector.multi_reduction <add>, %26, %cst_16 [1] : vector<1x128xf32> to vector<1xf32>
    %28 = vector.shape_cast %27 : vector<1xf32> to vector<1x1xf32>
    %29 = vector.broadcast %28 : vector<1x1xf32> to vector<1x128xf32>
    %30 = arith.divf %26, %29 : vector<1x128xf32>
    %c0_17 = arith.constant 0 : index
    %c0_18 = arith.constant 0 : index
    %c0_19 = arith.constant 0 : index
    %31 = vector.load %arg6[%c0_17, %c0_18, %c0_19] : memref<1x1x128xf32, #tpu.memory_space<vmem>>, vector<1x1x128xf32>
    %32 = vector.shape_cast %31 : vector<1x1x128xf32> to vector<1x128xf32>
    %33 = vector.shape_cast %30 : vector<1x128xf32> to vector<1x1x128xf32>
    tpu.vector_store %arg6[%c0_17, %c0_18, %c0_19], %33 {strides = array<i32>} : memref<1x1x128xf32, #tpu.memory_space<vmem>>, vector<1x1x128xf32>,
    return
  }
  func.func @transform_0(%arg0: i32) -> (i32, i32, i32) {
    %c0_i32 = arith.constant 0 : i32
    %c0_i32_0 = arith.constant 0 : i32
    %c0_i32_1 = arith.constant 0 : i32
    return %arg0, %c0_i32, %c0_i32_0 : i32, i32, i32
  }
  func.func @transform_1(%arg0: i32) -> (i32, i32) {
    %c0_i32 = arith.constant 0 : i32
    %c0_i32_0 = arith.constant 0 : i32
    %c0_i32_1 = arith.constant 0 : i32
    return %c0_i32, %c0_i32_0 : i32, i32
  }
  func.func @transform_2(%arg0: i32) -> (i32, i32) {
    %c0_i32 = arith.constant 0 : i32
    %c0_i32_0 = arith.constant 0 : i32
    %c0_i32_1 = arith.constant 0 : i32
    return %c0_i32, %c0_i32_0 : i32, i32
  }
  func.func @transform_3(%arg0: i32) -> (i32, i32) {
    %c0_i32 = arith.constant 0 : i32
    %c0_i32_0 = arith.constant 0 : i32
    %c0_i32_1 = arith.constant 0 : i32
    return %c0_i32, %c0_i32_0 : i32, i32
  }
  func.func @transform_4(%arg0: i32) -> (i32, i32) {
    %c0_i32 = arith.constant 0 : i32
    %c0_i32_0 = arith.constant 0 : i32
    %c0_i32_1 = arith.constant 0 : i32
    return %c0_i32, %c0_i32_0 : i32, i32
  }
  func.func @transform_5(%arg0: i32) -> (i32, i32, i32) {
    %c0_i32 = arith.constant 0 : i32
    %c0_i32_0 = arith.constant 0 : i32
    %c0_i32_1 = arith.constant 0 : i32
    return %arg0, %c0_i32, %c0_i32_0 : i32, i32, i32
  }
}

</mosaic_0001>

<llo_original>
// kernel: digit_model_forward.1
$region0: #{digit_model_forward.1}
  #allocation0 [shape = 'u32[]', space=smem, size = 0x4, offset = 0x4, fixed_abs, tag = 'smem constant byte address 0x4 - core index']
  #allocation1 [shape = 'u32[144,128]{1,0:T(1,128)}', space=vmem, size = 0x12000, scoped, tag = 'internal scratch']
  %s0 = inlined_call_operand.vmem [shape: bf16[2,256,32], index: 0, kind: input, shape index: {}]
  %s1 = inlined_call_operand.vmem [shape: bf16[32,128], index: 1, kind: input, shape index: {}]
  %s2 = inlined_call_operand.vmem [shape: f32[1,128], index: 2, kind: input, shape index: {}]
  %s3 = inlined_call_operand.vmem [shape: f32[128,128], index: 3, kind: input, shape index: {}]
  %s4 = inlined_call_operand.vmem [shape: f32[1,128], index: 4, kind: input, shape index: {}]
  %s5 = inlined_call_operand.hbm [shape: f32[2,1,128], index: 5, kind: output, shape index: {}]
  %s6 = sld [smem:[#allocation0]]
  $region53: #{digit_model_forward.1} parent=0
    _
  %s8 = ssub.s32 1, %s6
  %s9 = scalar_select 0, %s8, %s6
  $region1: #{digit_model_forward.1} parent=0
    #allocation2 [shape = 'u8[1024]{0}', space=vmem, size = 0x400, scoped, tag = 'output window, operand 0']
    #allocation3 [shape = 's32[2]{0}', space=sflag, size = 0x8, scoped, tag = 'scoped memory for digit_model_forward.1']
    %10 = vsyncpa [#allocation3], 0
    %s11 = scalar_lea.sflag [#allocation3], 1
    %12 = vsyncpa %s11, 0
    loop: start=0, step=1, limit=4
    $region2: #{digit_model_forward.1} parent=1 // loop_pre_header
      _
    $region3: #{digit_model_forward.1} parent=1 // loop_header
      %s14 = sphi 0, %s18
      %p15 = scmp.ge.s32.totalorder %s14, 4
      %s24 = sphi 0, %s26
      %s27 = sphi 0, %s24
      %s28 = sphi 0, %s27
      %s44 = sphi 0, %s28
      %s48 = sphi 0, %s48
      %s50 = sphi 0, %s48
      %s51 = sphi 0, %s50
      %s65 = sphi 0, %s51
      %s69 = sphi 0, %s69
      %s71 = sphi 0, %s69
      %s72 = sphi 0, %s71
      %s86 = sphi 0, %s72
      %s90 = sphi 0, %s90
      %s92 = sphi 0, %s90
      %s93 = sphi 0, %s92
      %s107 = sphi 0, %s93
      %s111 = sphi 0, %s111
      %s113 = sphi 0, %s111
      %s114 = sphi 0, %s113
      %s128 = sphi 0, %s114
      %s134 = sphi 0, %s136
      %s137 = sphi 0, %s134
      %s138 = sphi 0, %s137
      %s154 = sphi 0, %s138
    $region4: #{digit_model_forward.1} parent=1 // loop_header_branch
      %17 = sbr.rel (%p15) target = $region8
    $region5: #{digit_model_forward.1} parent=1 // loop_body
      %s19 = ssub.s32 %s14, 1
      %s20 = ssub.s32 %s14, 2
      %s21 = sadd.s32 %s14, 1
      %s22 = ssub.s32 %s14, %s21
      %p23 = scmp.eq.s32.totalorder %s22, 0
      %s25 = sadd.s32 %s24, 1
      %s26 = scalar_select %p23, %s24, %s25
      %p29 = pneg %p23
      %p30 = scmp.eq.s32.totalorder %s14, 1
      %p31 = por %p29, %p30
      %p32 = scmp.ne.s32.totalorder %s24, %s27
      %p33 = scmp.eq.s32.totalorder %s14, 0
      %p34 = por %p32, %p33
      %p35 = scmp.ne.s32.totalorder %s24, %s27
      %p36 = scmp.eq.s32.totalorder %s19, 1
      %p37 = por %p35, %p36
      %p38 = scmp.ne.s32.totalorder %s27, %s28
      %p39 = scmp.eq.s32.totalorder %s19, 0
      %p40 = por %p38, %p39
      %p41 = scmp.ne.s32.totalorder %s27, %s28
      %p42 = scmp.eq.s32.totalorder %s20, 1
      %p43 = por %p41, %p42
      %p45 = scmp.ne.s32.totalorder %s28, %s44
      %p46 = scmp.eq.s32.totalorder %s20, 0
      %p47 = por %p45, %p46
      %s49 = sadd.s32 %s48, 1
      %p52 = scmp.eq.s32.totalorder %s14, 1
      %p53 = scmp.ne.s32.totalorder %s48, %s50
      %p54 = scmp.eq.s32.totalorder %s14, 0
      %p55 = por %p53, %p54
      %p56 = scmp.ne.s32.totalorder %s48, %s50
      %p57 = scmp.eq.s32.totalorder %s19, 1
      %p58 = por %p56, %p57
      %p59 = scmp.ne.s32.totalorder %s50, %s51
      %p60 = scmp.eq.s32.totalorder %s19, 0
      %p61 = por %p59, %p60
      %p62 = scmp.ne.s32.totalorder %s50, %s51
      %p63 = scmp.eq.s32.totalorder %s20, 1
      %p64 = por %p62, %p63
      %p66 = scmp.ne.s32.totalorder %s51, %s65
      %p67 = scmp.eq.s32.totalorder %s20, 0
      %p68 = por %p66, %p67
      %s70 = sadd.s32 %s69, 1
      %p73 = scmp.eq.s32.totalorder %s14, 1
      %p74 = scmp.ne.s32.totalorder %s69, %s71
      %p75 = scmp.eq.s32.totalorder %s14, 0
      %p76 = por %p74, %p75
      %p77 = scmp.ne.s32.totalorder %s69, %s71
      %p78 = scmp.eq.s32.totalorder %s19, 1
      %p79 = por %p77, %p78
      %p80 = scmp.ne.s32.totalorder %s71, %s72
      %p81 = scmp.eq.s32.totalorder %s19, 0
      %p82 = por %p80, %p81
      %p83 = scmp.ne.s32.totalorder %s71, %s72
      %p84 = scmp.eq.s32.totalorder %s20, 1
      %p85 = por %p83, %p84
      %p87 = scmp.ne.s32.totalorder %s72, %s86
      %p88 = scmp.eq.s32.totalorder %s20, 0
      %p89 = por %p87, %p88
      %s91 = sadd.s32 %s90, 1
      %p94 = scmp.eq.s32.totalorder %s14, 1
      %p95 = scmp.ne.s32.totalorder %s90, %s92
      %p96 = scmp.eq.s32.totalorder %s14, 0
      %p97 = por %p95, %p96
      %p98 = scmp.ne.s32.totalorder %s90, %s92
      %p99 = scmp.eq.s32.totalorder %s19, 1
      %p100 = por %p98, %p99
      %p101 = scmp.ne.s32.totalorder %s92, %s93
      %p102 = scmp.eq.s32.totalorder %s19, 0
      %p103 = por %p101, %p102
      %p104 = scmp.ne.s32.totalorder %s92, %s93
      %p105 = scmp.eq.s32.totalorder %s20, 1
      %p106 = por %p104, %p105
      %p108 = scmp.ne.s32.totalorder %s93, %s107
      %p109 = scmp.eq.s32.totalorder %s20, 0
      %p110 = por %p108, %p109
      %s112 = sadd.s32 %s111, 1
      %p115 = scmp.eq.s32.totalorder %s14, 1
      %p116 = scmp.ne.s32.totalorder %s111, %s113
      %p117 = scmp.eq.s32.totalorder %s14, 0
      %p118 = por %p116, %p117
      %p119 = scmp.ne.s32.totalorder %s111, %s113
      %p120 = scmp.eq.s32.totalorder %s19, 1
      %p121 = por %p119, %p120
      %p122 = scmp.ne.s32.totalorder %s113, %s114
      %p123 = scmp.eq.s32.totalorder %s19, 0
      %p124 = por %p122, %p123
      %p125 = scmp.ne.s32.totalorder %s113, %s114
      %p126 = scmp.eq.s32.totalorder %s20, 1
      %p127 = por %p125, %p126
      %p129 = scmp.ne.s32.totalorder %s114, %s128
      %p130 = scmp.eq.s32.totalorder %s20, 0
      %p131 = por %p129, %p130
      %s132 = ssub.s32 %s14, %s21
      %p133 = scmp.eq.s32.totalorder %s132, 0
      %s135 = sadd.s32 %s134, 1
      %s136 = scalar_select %p133, %s134, %s135
      %p139 = pneg %p133
      %p140 = scmp.eq.s32.totalorder %s14, 1
      %p141 = por %p139, %p140
      %p142 = scmp.ne.s32.totalorder %s134, %s137
      %p143 = scmp.eq.s32.totalorder %s14, 0
      %p144 = por %p142, %p143
      %p145 = scmp.ne.s32.totalorder %s134, %s137
      %p146 = scmp.eq.s32.totalorder %s19, 1
      %p147 = por %p145, %p146
      %p148 = scmp.ne.s32.totalorder %s137, %s138
      %p149 = scmp.eq.s32.totalorder %s19, 0
      %p150 = por %p148, %p149
      %p151 = scmp.ne.s32.totalorder %s137, %s138
      %p152 = scmp.eq.s32.totalorder %s20, 1
      %p153 = por %p151, %p152
      %p155 = scmp.ne.s32.totalorder %s138, %s154
      %p156 = scmp.eq.s32.totalorder %s20, 0
      %p157 = por %p155, %p156
      %p158 = scmp.le.s32.totalorder 1, %s14
      %p159 = scmp.lt.s32.totalorder %s14, 3
      %p160 = pnand %p158, %p159
      %p161 = pneg %p160
      // Predicated region
      $region9: #{digit_model_forward.1} parent=5 // pred_check
        _
      $region10: #{digit_model_forward.1} parent=5 // pred_check_branch
        %163 = sbr.rel (%p160) target = $region12
      $region11: #{digit_model_forward.1} parent=5 // pred_region
        %s164 = ssub.s32 %s14, 1
        // Predicated region
        $region13: #{digit_model_forward.1} parent=11 // pred_check
          %p165 = pneg %p61
        $region14: #{digit_model_forward.1} parent=11 // pred_check_branch
          %167 = sbr.rel (%p165) target = $region16
        $region15: #{digit_model_forward.1} parent=11 // pred_region
          _
        $region16: #{digit_model_forward.1} parent=11 // pred_fallthru
          _
        // Predicated region
        $region17: #{digit_model_forward.1} parent=11 // pred_check
          %p168 = pneg %p82
        $region18: #{digit_model_forward.1} parent=11 // pred_check_branch
          %170 = sbr.rel (%p168) target = $region20
        $region19: #{digit_model_forward.1} parent=11 // pred_region
          _
        $region20: #{digit_model_forward.1} parent=11 // pred_fallthru
          _
        // Predicated region
        $region21: #{digit_model_forward.1} parent=11 // pred_check
          %p171 = pneg %p103
        $region22: #{digit_model_forward.1} parent=11 // pred_check_branch
          %173 = sbr.rel (%p171) target = $region24
        $region23: #{digit_model_forward.1} parent=11 // pred_region
          _
        $region24: #{digit_model_forward.1} parent=11 // pred_fallthru
          _
        // Predicated region
        $region25: #{digit_model_forward.1} parent=11 // pred_check
          %p174 = pneg %p124
        $region26: #{digit_model_forward.1} parent=11 // pred_check_branch
          %176 = sbr.rel (%p174) target = $region28
        $region27: #{digit_model_forward.1} parent=11 // pred_region
          _
        $region28: #{digit_model_forward.1} parent=11 // pred_fallthru
          _
      $region12: #{digit_model_forward.1} parent=5 // pred_fallthru
        _
      %p177 = scmp.lt.s32.totalorder %s14, 2
      // Predicated region
      $region29: #{digit_model_forward.1} parent=5 // pred_check
        %p178 = pneg %p177
      $region30: #{digit_model_forward.1} parent=5 // pred_check_branch
        %180 = sbr.rel (%p178) target = $region32
      $region31: #{digit_model_forward.1} parent=5 // pred_region
        // Predicated region
        $region33: #{digit_model_forward.1} parent=31 // pred_check
          %p181 = pneg %p34
        $region34: #{digit_model_forward.1} parent=31 // pred_check_branch
          %183 = sbr.rel (%p181) target = $region36
        $region35: #{digit_model_forward.1} parent=31 // pred_region
          %p184 = scmp.lt.s32.totalorder %s14, 1
          %s185 = scalar_select %p184, %s14, 1
          %s186 = smul.addr %s185, 32
          %s187 = smul.addr %s186, 4
          %s188 = scalar_lea.vmem %s0, %s187
        $region36: #{digit_model_forward.1} parent=31 // pred_fallthru
          _
      $region32: #{digit_model_forward.1} parent=5 // pred_fallthru
        _
      %p189 = scmp.le.s32.totalorder 1, %s14
      %p190 = scmp.lt.s32.totalorder %s14, 3
      %p191 = pnand %p189, %p190
      %p192 = pneg %p191
      // Predicated region
      $region37: #{digit_model_forward.1} parent=5 // pred_check
        _
      $region38: #{digit_model_forward.1} parent=5 // pred_check_branch
        %194 = sbr.rel (%p191) target = $region40
      $region39: #{digit_model_forward.1} parent=5 // pred_region
        %s195 = ssub.s32 %s14, 1
        %p196 = scmp.lt.s32.totalorder %s19, 1
        %s197 = scalar_select %p196, %s19, 1
        %s198 = smul.addr %s197, 32
        %s199 = smul.addr %s198, 4
        %s200 = scalar_lea.vmem %s0, %s199
        %p201 = pneg %p40
        %p202 = pneg %p37
        %p203 = pneg %p61
        %p204 = pneg %p58
        %p205 = pneg %p82
        %p206 = pneg %p79
        %p207 = pneg %p103
        %p208 = pneg %p100
        %p209 = pneg %p124
        %p210 = pneg %p121
        %p211 = pneg %p150
        %p212 = pneg %p147
        %s213 = sand.u32 %s137, 1
        %s214 = scalar_lea.sflag [#allocation3], %s213
        %s215 = sand.u32 %s137, 1
        %s216 = scalar_lea.vmem [#allocation2], %s215
        %p217 = scmp.lt.s32.totalorder %s19, 1
        %s218 = scalar_select %p217, %s19, 1
        %s219 = smul.addr %s218, 32
        %s220 = smul.addr %s219, 4
        %s221 = scalar_lea.vmem %s0, %s220
        %v223 = vld [vmem:[%s221] sm:$0xf]
        %v224 = vld [vmem:[%s221 + $0x4] sm:$0xf]
        %v225 = vld [vmem:[%s221 + $0x8] sm:$0xf]
        %v226 = vld [vmem:[%s221 + $0xc] sm:$0xf]
        %v227 = vld [vmem:[%s221 + $0x10] sm:$0xf]
        %v228 = vld [vmem:[%s221 + $0x14] sm:$0xf]
        %v229 = vld [vmem:[%s221 + $0x18] sm:$0xf]
        %v230 = vld [vmem:[%s221 + $0x1c] sm:$0xf]
        %v231 = vld [vmem:[%s221 + $0x20] sm:$0xf]
        %v232 = vld [vmem:[%s221 + $0x24] sm:$0xf]
        %v233 = vld [vmem:[%s221 + $0x28] sm:$0xf]
        %v234 = vld [vmem:[%s221 + $0x2c] sm:$0xf]
        %v235 = vld [vmem:[%s221 + $0x30] sm:$0xf]
        %v236 = vld [vmem:[%s221 + $0x34] sm:$0xf]
        %v237 = vld [vmem:[%s221 + $0x38] sm:$0xf]
        %v238 = vld [vmem:[%s221 + $0x3c] sm:$0xf]
        %v239 = vld [vmem:[%s221 + $0x40] sm:$0xf]
        %v240 = vld [vmem:[%s221 + $0x44] sm:$0xf]
        %v241 = vld [vmem:[%s221 + $0x48] sm:$0xf]
        %v242 = vld [vmem:[%s221 + $0x4c] sm:$0xf]
        %v243 = vld [vmem:[%s221 + $0x50] sm:$0xf]
        %v244 = vld [vmem:[%s221 + $0x54] sm:$0xf]
        %v245 = vld [vmem:[%s221 + $0x58] sm:$0xf]
        %v246 = vld [vmem:[%s221 + $0x5c] sm:$0xf]
        %v247 = vld [vmem:[%s221 + $0x60] sm:$0xf]
        %v248 = vld [vmem:[%s221 + $0x64] sm:$0xf]
        %v249 = vld [vmem:[%s221 + $0x68] sm:$0xf]
        %v250 = vld [vmem:[%s221 + $0x6c] sm:$0xf]
        %v251 = vld [vmem:[%s221 + $0x70] sm:$0xf]
        %v252 = vld [vmem:[%s221 + $0x74] sm:$0xf]
        %v253 = vld [vmem:[%s221 + $0x78] sm:$0xf]
        %v254 = vld [vmem:[%s221 + $0x7c] sm:$0xf]
        %v255 = vld [vmem:[%s1] sm:$0xf]
        %v256 = vld [vmem:[%s1 + $0x4] sm:$0xf]
        %v257 = vld [vmem:[%s1 + $0x8] sm:$0xf]
        %v258 = vld [vmem:[%s1 + $0xc] sm:$0xf]
        %v259 = vld [vmem:[%s2] sm:$0x1]
        %v261 = vlaneseq
        %v262 = vshrl.u32 %v261, 7
        %v263 = vsub.s32 0, %v262
        %v264 = vrot.slane %v259, %v263
        %v298 = vunpack.c.l.b16 %v223
        %v299 = vunpack.c.l.b16 %v224
        %v300 = vunpack.c.l.b16 %v225
        %v301 = vunpack.c.l.b16 %v226
        %v302 = vunpack.c.l.b16 %v227
        %v303 = vunpack.c.l.b16 %v228
        %v304 = vunpack.c.l.b16 %v229
        %v305 = vunpack.c.l.b16 %v230
        %v306 = vunpack.c.l.b16 %v231
        %v307 = vunpack.c.l.b16 %v232
        %v308 = vunpack.c.l.b16 %v233
        %v309 = vunpack.c.l.b16 %v234
        %v310 = vunpack.c.l.b16 %v235
        %v311 = vunpack.c.l.b16 %v236
        %v312 = vunpack.c.l.b16 %v237
        %v313 = vunpack.c.l.b16 %v238
        %v314 = vunpack.c.l.b16 %v239
        %v315 = vunpack.c.l.b16 %v240
        %v316 = vunpack.c.l.b16 %v241
        %v317 = vunpack.c.l.b16 %v242
        %v318 = vunpack.c.l.b16 %v243
        %v319 = vunpack.c.l.b16 %v244
        %v320 = vunpack.c.l.b16 %v245
        %v321 = vunpack.c.l.b16 %v246
        %v322 = vunpack.c.l.b16 %v247
        %v323 = vunpack.c.l.b16 %v248
        %v324 = vunpack.c.l.b16 %v249
        %v325 = vunpack.c.l.b16 %v250
        %v326 = vunpack.c.l.b16 %v251
        %v327 = vunpack.c.l.b16 %v252
        %v328 = vunpack.c.l.b16 %v253
        %v329 = vunpack.c.l.b16 %v254
        %v330 = vpack.c.b16 %v299, %v298
        %v331 = vpack.c.b16 %v301, %v300
        %v332 = vpack.c.b16 %v303, %v302
        %v333 = vpack.c.b16 %v305, %v304
        %v334 = vpack.c.b16 %v307, %v306
        %v335 = vpack.c.b16 %v309, %v308
        %v336 = vpack.c.b16 %v311, %v310
        %v337 = vpack.c.b16 %v313, %v312
        %v338 = vpack.c.b16 %v315, %v314
        %v339 = vpack.c.b16 %v317, %v316
        %v340 = vpack.c.b16 %v319, %v318
        %v341 = vpack.c.b16 %v321, %v320
        %v342 = vpack.c.b16 %v323, %v322
        %v343 = vpack.c.b16 %v325, %v324
        %v344 = vpack.c.b16 %v327, %v326
        %v345 = vpack.c.b16 %v329, %v328
        %v350 = vunpack.c.l.b16 %v255
        %v351 = vunpack.c.l.b16 %v256
        %v352 = vunpack.c.l.b16 %v257
        %v353 = vunpack.c.l.b16 %v258
        %v354 = vpack.c.b16 %v351, %v350
        %v355 = vpack.c.b16 %v353, %v352
        %vm358 = vcmask 261120
        %v360 = vsel %vm358, %v330, 0
        %v363 = vsel %vm358, %v331, 0
        %v366 = vsel %vm358, %v332, 0
        %v369 = vsel %vm358, %v333, 0
        %v372 = vsel %vm358, %v334, 0
        %v375 = vsel %vm358, %v335, 0
        %v378 = vsel %vm358, %v336, 0
        %v381 = vsel %vm358, %v337, 0
        %v384 = vsel %vm358, %v338, 0
        %v387 = vsel %vm358, %v339, 0
        %v390 = vsel %vm358, %v340, 0
        %v393 = vsel %vm358, %v341, 0
        %v396 = vsel %vm358, %v342, 0
        %v399 = vsel %vm358, %v343, 0
        %v402 = vsel %vm358, %v344, 0
        %v405 = vsel %vm358, %v345, 0
        %407 = vmatprep.subr.bf16.mxu0 0
        %408 = vmatpush1.bf16.msra.mxu0 0
        %409 = vmatprep.subr.bf16.mxu0 0
        %410 = vmatpush1.bf16.msra.mxu0 0
        %411 = vmatprep.subr.bf16.mxu0 0
        %412 = vmatpush1.bf16.msra.mxu0 0
        %413 = vmatprep.subr.bf16.mxu0 0
        %414 = vmatpush1.bf16.msra.mxu0 0
        %415 = vmatprep.subr.bf16.mxu0 0
        %416 = vmatpush1.bf16.msra.mxu0 0
        %417 = vmatprep.subr.bf16.mxu0 0
        %418 = vmatpush1.bf16.msra.mxu0 0
        %419 = vmatprep.subr.bf16.mxu0 0
        %420 = vmatpush1.bf16.msra.mxu0 %v355
        %421 = vmatprep.subr.bf16.mxu0 0
        %422 = vmatpush1.bf16.msra.mxu0 %v354
        %423 = vmatprep.subr.bf16.mxu0 0
        %424 = vmatpush2.bf16.msra.mxu0 0
        %425 = vmatprep.subr.bf16.mxu0 0
        %426 = vmatpush2.bf16.msra.mxu0 0
        %427 = vmatprep.subr.bf16.mxu0 0
        %428 = vmatpush2.bf16.msra.mxu0 0
        %429 = vmatprep.subr.bf16.mxu0 0
        %430 = vmatpush2.bf16.msra.mxu0 0
        %431 = vmatprep.subr.bf16.mxu0 0
        %432 = vmatpush2.bf16.msra.mxu0 0
        %433 = vmatprep.subr.bf16.mxu0 0
        %434 = vmatpush2.bf16.msra.mxu0 0
        %435 = vmatprep.subr.bf16.mxu0 0
        %436 = vmatpush2.bf16.msra.mxu0 0
        %437 = vmatprep.subr.bf16.mxu0 0
        %438 = vmatpush2.bf16.msra.mxu0 0
        %439 = vmatprep.mubr.bf16.mxu0 0
        %440 = vmatmul.mubr.bf16.gmra.mxu0 %v360
        %v441 = vpop.f32.mrf.mxu0
        %v442 = vadd.f32 %v264, %v441
        %v443 = vpop.f32.mrf.mxu0
        %v444 = vpop.f32.mrf.mxu0
        %v445 = vadd.f32 %v264, %v444
        %v446 = vpop.f32.mrf.mxu0
        %447 = vmatprep.mubr.bf16.mxu0 0
        %448 = vmatmul.mubr.bf16.gmra.mxu0 %v363
        %v449 = vpop.f32.mrf.mxu0
        %v450 = vadd.f32 %v264, %v449
        %v451 = vpop.f32.mrf.mxu0
        %v452 = vpop.f32.mrf.mxu0
        %v453 = vadd.f32 %v264, %v452
        %v454 = vpop.f32.mrf.mxu0
        %455 = vmatprep.mubr.bf16.mxu0 0
        %456 = vmatmul.mubr.bf16.gmra.mxu0 %v366
        %v457 = vpop.f32.mrf.mxu0
        %v458 = vadd.f32 %v264, %v457
        %v459 = vpop.f32.mrf.mxu0
        %v460 = vpop.f32.mrf.mxu0
        %v461 = vadd.f32 %v264, %v460
        %v462 = vpop.f32.mrf.mxu0
        %463 = vmatprep.mubr.bf16.mxu0 0
        %464 = vmatmul.mubr.bf16.gmra.mxu0 %v369
        %v465 = vpop.f32.mrf.mxu0
        %v466 = vadd.f32 %v264, %v465
        %v467 = vpop.f32.mrf.mxu0
        %v468 = vpop.f32.mrf.mxu0
        %v469 = vadd.f32 %v264, %v468
        %v470 = vpop.f32.mrf.mxu0
        %471 = vmatprep.mubr.bf16.mxu0 0
        %472 = vmatmul.mubr.bf16.gmra.mxu0 %v372
        %v473 = vpop.f32.mrf.mxu0
        %v474 = vadd.f32 %v264, %v473
        %v475 = vpop.f32.mrf.mxu0
        %v476 = vpop.f32.mrf.mxu0
        %v477 = vadd.f32 %v264, %v476
        %v478 = vpop.f32.mrf.mxu0
        %479 = vmatprep.mubr.bf16.mxu0 0
        %480 = vmatmul.mubr.bf16.gmra.mxu0 %v375
        %v481 = vpop.f32.mrf.mxu0
        %v482 = vadd.f32 %v264, %v481
        %v483 = vpop.f32.mrf.mxu0
        %v484 = vpop.f32.mrf.mxu0
        %v485 = vadd.f32 %v264, %v484
        %v486 = vpop.f32.mrf.mxu0
        %487 = vmatprep.mubr.bf16.mxu0 0
        %488 = vmatmul.mubr.bf16.gmra.mxu0 %v378
        %v489 = vpop.f32.mrf.mxu0
        %v490 = vadd.f32 %v264, %v489
        %v491 = vpop.f32.mrf.mxu0
        %v492 = vpop.f32.mrf.mxu0
        %v493 = vadd.f32 %v264, %v492
        %v494 = vpop.f32.mrf.mxu0
        %495 = vmatprep.mubr.bf16.mxu0 0
        %496 = vmatmul.mubr.bf16.gmra.mxu0 %v381
        %v497 = vpop.f32.mrf.mxu0
        %v498 = vadd.f32 %v264, %v497
        %v499 = vpop.f32.mrf.mxu0
        %v500 = vpop.f32.mrf.mxu0
        %v501 = vadd.f32 %v264, %v500
        %v502 = vpop.f32.mrf.mxu0
        %503 = vmatprep.mubr.bf16.mxu0 0
        %504 = vmatmul.mubr.bf16.gmra.mxu0 %v384
        %v505 = vpop.f32.mrf.mxu0
        %v506 = vadd.f32 %v264, %v505
        %v507 = vpop.f32.mrf.mxu0
        %v508 = vpop.f32.mrf.mxu0
        %v509 = vadd.f32 %v264, %v508
        %v510 = vpop.f32.mrf.mxu0
        %511 = vmatprep.mubr.bf16.mxu0 0
        %512 = vmatmul.mubr.bf16.gmra.mxu0 %v387
        %v513 = vpop.f32.mrf.mxu0
        %v514 = vadd.f32 %v264, %v513
        %v515 = vpop.f32.mrf.mxu0
        %v516 = vpop.f32.mrf.mxu0
        %v517 = vadd.f32 %v264, %v516
        %v518 = vpop.f32.mrf.mxu0
        %519 = vmatprep.mubr.bf16.mxu0 0
        %520 = vmatmul.mubr.bf16.gmra.mxu0 %v390
        %v521 = vpop.f32.mrf.mxu0
        %v522 = vadd.f32 %v264, %v521
        %v523 = vpop.f32.mrf.mxu0
        %v524 = vpop.f32.mrf.mxu0
        %v525 = vadd.f32 %v264, %v524
        %v526 = vpop.f32.mrf.mxu0
        %527 = vmatprep.mubr.bf16.mxu0 0
        %528 = vmatmul.mubr.bf16.gmra.mxu0 %v393
        %v529 = vpop.f32.mrf.mxu0
        %v530 = vadd.f32 %v264, %v529
        %v531 = vpop.f32.mrf.mxu0
        %v532 = vpop.f32.mrf.mxu0
        %v533 = vadd.f32 %v264, %v532
        %v534 = vpop.f32.mrf.mxu0
        %535 = vmatprep.mubr.bf16.mxu0 0
        %536 = vmatmul.mubr.bf16.gmra.mxu0 %v396
        %v537 = vpop.f32.mrf.mxu0
        %v538 = vadd.f32 %v264, %v537
        %v539 = vpop.f32.mrf.mxu0
        %v540 = vpop.f32.mrf.mxu0
        %v541 = vadd.f32 %v264, %v540
        %v542 = vpop.f32.mrf.mxu0
        %543 = vmatprep.mubr.bf16.mxu0 0
        %544 = vmatmul.mubr.bf16.gmra.mxu0 %v399
        %v545 = vpop.f32.mrf.mxu0
        %v546 = vadd.f32 %v264, %v545
        %v547 = vpop.f32.mrf.mxu0
        %v548 = vpop.f32.mrf.mxu0
        %v549 = vadd.f32 %v264, %v548
        %v550 = vpop.f32.mrf.mxu0
        %551 = vmatprep.mubr.bf16.mxu0 0
        %552 = vmatmul.mubr.bf16.gmra.mxu0 %v402
        %v553 = vpop.f32.mrf.mxu0
        %v554 = vadd.f32 %v264, %v553
        %v555 = vpop.f32.mrf.mxu0
        %v556 = vpop.f32.mrf.mxu0
        %v557 = vadd.f32 %v264, %v556
        %v558 = vpop.f32.mrf.mxu0
        %559 = vmatprep.mubr.bf16.mxu0 0
        %560 = vmatmul.mubr.bf16.gmra.mxu0 %v405
        %v561 = vpop.f32.mrf.mxu0
        %v562 = vadd.f32 %v264, %v561
        %v563 = vpop.f32.mrf.mxu0
        %v564 = vpop.f32.mrf.mxu0
        %v565 = vadd.f32 %v264, %v564
        %v566 = vpop.f32.mrf.mxu0
        %567 = vdwg.mxu0
        %v568 = vmax.f32 %v442, 0.0
        %v569 = vmax.f32 %v445, 0.0
        %v570 = vmax.f32 %v450, 0.0
        %v571 = vmax.f32 %v453, 0.0
        %v572 = vmax.f32 %v458, 0.0
        %v573 = vmax.f32 %v461, 0.0
        %v574 = vmax.f32 %v466, 0.0
        %v575 = vmax.f32 %v469, 0.0
        %v576 = vmax.f32 %v474, 0.0
        %v577 = vmax.f32 %v477, 0.0
        %v578 = vmax.f32 %v482, 0.0
        %v579 = vmax.f32 %v485, 0.0
        %v580 = vmax.f32 %v490, 0.0
        %v581 = vmax.f32 %v493, 0.0
        %v582 = vmax.f32 %v498, 0.0
        %v583 = vmax.f32 %v501, 0.0
        %v584 = vmax.f32 %v506, 0.0
        %v585 = vmax.f32 %v509, 0.0
        %v586 = vmax.f32 %v514, 0.0
        %v587 = vmax.f32 %v517, 0.0
        %v588 = vmax.f32 %v522, 0.0
        %v589 = vmax.f32 %v525, 0.0
        %v590 = vmax.f32 %v530, 0.0
        %v591 = vmax.f32 %v533, 0.0
        %v592 = vmax.f32 %v538, 0.0
        %v593 = vmax.f32 %v541, 0.0
        %v594 = vmax.f32 %v546, 0.0
        %v595 = vmax.f32 %v549, 0.0
        %v596 = vmax.f32 %v554, 0.0
        %v597 = vmax.f32 %v557, 0.0
        %v598 = vmax.f32 %v562, 0.0
        %v599 = vmax.f32 %v565, 0.0
        %v600 = vadd.f32 %v568, %v569
        %v601 = vadd.f32 %v600, %v570
        %v602 = vadd.f32 %v601, %v571
        %v603 = vadd.f32 %v602, %v572
        %v604 = vadd.f32 %v603, %v573
        %v605 = vadd.f32 %v604, %v574
        %v606 = vadd.f32 %v605, %v575
        %v607 = vadd.f32 %v606, %v576
        %v608 = vadd.f32 %v607, %v577
        %v609 = vadd.f32 %v608, %v578
        %v610 = vadd.f32 %v609, %v579
        %v611 = vadd.f32 %v610, %v580
        %v612 = vadd.f32 %v611, %v581
        %v613 = vadd.f32 %v612, %v582
        %v614 = vadd.f32 %v613, %v583
        %v615 = vadd.f32 %v614, %v584
        %v616 = vadd.f32 %v615, %v585
        %v617 = vadd.f32 %v616, %v586
        %v618 = vadd.f32 %v617, %v587
        %v619 = vadd.f32 %v618, %v588
        %v620 = vadd.f32 %v619, %v589
        %v621 = vadd.f32 %v620, %v590
        %v622 = vadd.f32 %v621, %v591
        %v623 = vadd.f32 %v622, %v592
        %v624 = vadd.f32 %v623, %v593
        %v625 = vadd.f32 %v624, %v594
        %v626 = vadd.f32 %v625, %v595
        %v627 = vadd.f32 %v626, %v596
        %v628 = vadd.f32 %v627, %v597
        %v629 = vadd.f32 %v628, %v598
        %v630 = vadd.f32 %v629, %v599
        %v631 = vrot.slane %v630, 4
        %v632 = vadd.f32 %v630, %v631
        %v633 = vrot.slane %v632, 2
        %v634 = vadd.f32 %v632, %v633
        %v635 = vrot.slane %v634, 1
        %v636 = vadd.f32 %v634, %v635
        %v637 = vmul.f32 %v636, 0.00390625
        %v638 = vld [vmem:[%s3] sm:$0xff]
        %v639 = vld [vmem:[%s3 + $0x8] sm:$0xff]
        %v640 = vld [vmem:[%s3 + $0x10] sm:$0xff]
        %v641 = vld [vmem:[%s3 + $0x18] sm:$0xff]
        %v642 = vld [vmem:[%s3 + $0x20] sm:$0xff]
        %v643 = vld [vmem:[%s3 + $0x28] sm:$0xff]
        %v644 = vld [vmem:[%s3 + $0x30] sm:$0xff]
        %v645 = vld [vmem:[%s3 + $0x38] sm:$0xff]
        %v646 = vld [vmem:[%s3 + $0x40] sm:$0xff]
        %v647 = vld [vmem:[%s3 + $0x48] sm:$0xff]
        %v648 = vld [vmem:[%s3 + $0x50] sm:$0xff]
        %v649 = vld [vmem:[%s3 + $0x58] sm:$0xff]
        %v650 = vld [vmem:[%s3 + $0x60] sm:$0xff]
        %v651 = vld [vmem:[%s3 + $0x68] sm:$0xff]
        %v652 = vld [vmem:[%s3 + $0x70] sm:$0xff]
        %v653 = vld [vmem:[%s3 + $0x78] sm:$0xff]
        %v654 = vld [vmem:[%s4] sm:$0x1]
        %655 = vmatprep.subr.mxu0 0.0
        %656 = vmatpush1.msra.mxu0 %v653
        %657 = vmatprep.subr.mxu0 0.0
        %658 = vmatpush1.msra.mxu0 %v652
        %659 = vmatprep.subr.mxu0 0.0
        %660 = vmatpush1.msra.mxu0 %v651
        %661 = vmatprep.subr.mxu0 0.0
        %662 = vmatpush1.msra.mxu0 %v650
        %663 = vmatprep.subr.mxu0 0.0
        %664 = vmatpush1.msra.mxu0 %v649
        %665 = vmatprep.subr.mxu0 0.0
        %666 = vmatpush1.msra.mxu0 %v648
        %667 = vmatprep.subr.mxu0 0.0
        %668 = vmatpush1.msra.mxu0 %v647
        %669 = vmatprep.subr.mxu0 0.0
        %670 = vmatpush1.msra.mxu0 %v646
        %671 = vmatprep.subr.mxu0 0.0
        %672 = vmatpush1.msra.mxu0 %v645
        %673 = vmatprep.subr.mxu0 0.0
        %674 = vmatpush1.msra.mxu0 %v644
        %675 = vmatprep.subr.mxu0 0.0
        %676 = vmatpush1.msra.mxu0 %v643
        %677 = vmatprep.subr.mxu0 0.0
        %678 = vmatpush1.msra.mxu0 %v642
        %679 = vmatprep.subr.mxu0 0.0
        %680 = vmatpush1.msra.mxu0 %v641
        %681 = vmatprep.subr.mxu0 0.0
        %682 = vmatpush1.msra.mxu0 %v640
        %683 = vmatprep.subr.mxu0 0.0
        %684 = vmatpush1.msra.mxu0 %v639
        %685 = vmatprep.subr.mxu0 0.0
        %686 = vmatpush1.msra.mxu0 %v638
        %687 = vmatprep.subr.mxu0 0.0
        %688 = vmatpush2.msra.mxu0 0.0
        %689 = vmatprep.subr.mxu0 0.0
        %690 = vmatpush2.msra.mxu0 0.0
        %691 = vmatprep.subr.mxu0 0.0
        %692 = vmatpush2.msra.mxu0 0.0
        %693 = vmatprep.subr.mxu0 0.0
        %694 = vmatpush2.msra.mxu0 0.0
        %695 = vmatprep.subr.mxu0 0.0
        %696 = vmatpush2.msra.mxu0 0.0
        %697 = vmatprep.subr.mxu0 0.0
        %698 = vmatpush2.msra.mxu0 0.0
        %699 = vmatprep.subr.mxu0 0.0
        %700 = vmatpush2.msra.mxu0 0.0
        %701 = vmatprep.subr.mxu0 0.0
        %702 = vmatpush2.msra.mxu0 0.0
        %703 = vmatprep.subr.mxu0 0.0
        %704 = vmatpush2.msra.mxu0 0.0
        %705 = vmatprep.subr.mxu0 0.0
        %706 = vmatpush2.msra.mxu0 0.0
        %707 = vmatprep.subr.mxu0 0.0
        %708 = vmatpush2.msra.mxu0 0.0
        %709 = vmatprep.subr.mxu0 0.0
        %710 = vmatpush2.msra.mxu0 0.0
        %711 = vmatprep.subr.mxu0 0.0
        %712 = vmatpush2.msra.mxu0 0.0
        %713 = vmatprep.subr.mxu0 0.0
        %714 = vmatpush2.msra.mxu0 0.0
        %715 = vmatprep.subr.mxu0 0.0
        %716 = vmatpush2.msra.mxu0 0.0
        %717 = vmatprep.subr.mxu0 0.0
        %718 = vmatpush2.msra.mxu0 0.0
        %719 = vmatprep.mubr.f32.mxu0 0.0
        %720 = vmatmul.mubr.f32.gmra.mxu0 %v637
        %v721 = vpop.f32.mrf.mxu0
        %v722 = vadd.f32 %v654, %v721
        %v723 = vpop.f32.mrf.mxu0
        %724 = vdwg.mxu0
        %v725 = vlaneseq
        %v726 = vand.u32 %v725, 127
        %vm727 = vcmp.lt.s32.totalorder %v726, 10
        %v728 = vsel %vm727, %v722, -1e+30
        %vm729 = vcmask 1040384
        %v730 = vsel %vm729, %v728, -inf
        %731 = vmax.xlane.f32.xlu0 %v730
        %v732 = vpop.xlane.xlu0 %731
        %v733 = vsub.f32 %v728, %v732
        %v734 = vmul.f32 %v733, 1.442695
        %v735 = vpow.pop %v734
        %v736 = vsel %vm729, %v735, 0.0
        %737 = vadd.xlane.f32.xlu0 %v736
        %v738 = vpop.xlane.xlu0 %737
        %v739 = vrcp.pop %v738
        %v740 = vmul.f32 %v735, %v739
        %741 = vst [vmem:[%s216] sm:$0x1] %v740
        %s742 = sand.u32 %s137, 1
        %s743 = scalar_lea.sflag [#allocation3], %s742
        %s744 = sand.u32 %s137, 1
        %s745 = scalar_lea.vmem [#allocation2], %s744
        // Predicated region
        $region41: #{digit_model_forward.1} parent=39 // pred_check
          %p746 = pneg %p147
        $region42: #{digit_model_forward.1} parent=39 // pred_check_branch
          %748 = sbr.rel (%p746) target = $region44
        $region43: #{digit_model_forward.1} parent=39 // pred_region
          %s750 = ssub.s32 16, 16
          %751 = vsyncadd %s743, %s750
          %s752 = smul.addr %s19, 16
          %s753 = scalar_lea.hbm %s5, %s752
          %s755 = sshll.u32 %s745, 4
          %s756 = int_to_ptr.vmem [resolvable:$true] %s755
          %758 = dma.vmem_to_hbm [thread:$0]  %s756, 16, %s753, %s743
        $region44: #{digit_model_forward.1} parent=39 // pred_fallthru
          _
      $region40: #{digit_model_forward.1} parent=5 // pred_fallthru
        _
      %p759 = scmp.le.s32.totalorder 2, %s14
      // Predicated region
      $region45: #{digit_model_forward.1} parent=5 // pred_check
        %p760 = pneg %p759
      $region46: #{digit_model_forward.1} parent=5 // pred_check_branch
        %762 = sbr.rel (%p760) target = $region48
      $region47: #{digit_model_forward.1} parent=5 // pred_region
        %s763 = ssub.s32 %s14, 2
        // Predicated region
        $region49: #{digit_model_forward.1} parent=47 // pred_check
          %p764 = pneg %p153
        $region50: #{digit_model_forward.1} parent=47 // pred_check_branch
          %766 = sbr.rel (%p764) target = $region52
        $region51: #{digit_model_forward.1} parent=47 // pred_region
          %s767 = sand.u32 %s138, 1
          %s768 = scalar_lea.sflag [#allocation3], %s767
          %s769 = sand.u32 %s138, 1
          %s770 = scalar_lea.vmem [#allocation2], %s769
          %771 = dma.done %s768, 16
        $region52: #{digit_model_forward.1} parent=47 // pred_fallthru
          _
      $region48: #{digit_model_forward.1} parent=5 // pred_fallthru
        _
    $region6: #{digit_model_forward.1} parent=1 // loop_footer
      %s18 = sadd.s32 1, %s14
    $region7: #{digit_model_forward.1} parent=1 // loop_footer_branch
      %13 = sbr.rel target = $region3
    $region8: #{digit_model_forward.1} parent=1 // loop_exit
      _
    %772 = vsyncpa [#allocation3], 1
    %s773 = scalar_lea.sflag [#allocation3], 1
    %774 = vsyncpa %s773, 1

</llo_original>
